<compile_context>
chip_gen: v7x
topology: tpu7x:2x2x1
jax: 0.10.0
libtpu: 0.0.40
codegen_flags: <defaults>
</compile_context>

<pallas_src>
import functools

import jax
import jax.numpy as jnp
from jax.experimental import pallas as pl
from jax.experimental.pallas import tpu as pltpu


def mlp_kernel(x_ref, p_ref, o_ref, *, h_pad):
    # x_ref: (1, TB)                 batch on the lane axis
    # p_ref: (3*h_pad + 8, TB)       rows = [w1 | b1 | w2 | b2-row + zero pad],
    #                                already broadcast across lanes
    # o_ref: (1, TB)
    x = x_ref[...]                              # (1, TB)
    w1 = p_ref[0 * h_pad:1 * h_pad, :]          # (h_pad, TB)  static slices: free views
    b1 = p_ref[1 * h_pad:2 * h_pad, :]          # (h_pad, TB)
    w2 = p_ref[2 * h_pad:3 * h_pad, :]          # (h_pad, TB)
    b2 = p_ref[3 * h_pad:3 * h_pad + 1, :]      # (1, TB)

    # hidden = relu(x * w1 + b1): pure VPU elementwise (x sublane-broadcasts).
    h = jnp.maximum(w1 * x + b1, 0.0)           # (h_pad, TB)

    # out = sum_h(hidden * w2) + b2: elementwise multiply + sublane reduce.
    o = jnp.sum(h * w2, axis=0, keepdims=True) + b2   # (1, TB)
    o_ref[...] = o.astype(o_ref.dtype)


def _hidden_pad(n_hidden):
    return max(8, -(-n_hidden // 8) * 8)


def pack_params(w1, b1, w2, b2, *, batch_tile=512):
    """One-time parameter packing (hoisted out of the per-call hot path).

    w1: (1, H); b1: (1, H); w2: (H, 1); b2: (1, 1)
    Returns a (3*h_pad + 8, batch_tile) f32 array:
      rows [0, h_pad)        : w1 (zero padded), broadcast across lanes
      rows [h_pad, 2*h_pad)  : b1
      rows [2*h_pad, 3*h_pad): w2
      row  [3*h_pad]         : b2 (remaining 7 rows zero, sublane alignment)
    """
    assert batch_tile % 128 == 0, "batch_tile must be a multiple of 128 lanes"
    H = w1.shape[1]
    h_pad = _hidden_pad(H)
    col = jnp.concatenate([
        jnp.pad(w1[0, :].astype(jnp.float32), (0, h_pad - H)),
        jnp.pad(b1[0, :].astype(jnp.float32), (0, h_pad - H)),
        jnp.pad(w2[:, 0].astype(jnp.float32), (0, h_pad - H)),
        jnp.pad(b2.reshape(-1).astype(jnp.float32), (0, 7)),
    ])                                                        # (3*h_pad + 8,)
    return jnp.broadcast_to(col[:, None], (col.shape[0], batch_tile))


@jax.jit
def net_forward(x, packed_params):
    """x: (B, 1) -> (B, 1). packed_params from pack_params()."""
    B, F = x.shape
    assert F == 1, "kernel is specialized to n_feature=1"
    rows, batch_tile = packed_params.shape
    assert batch_tile % 128 == 0, "batch_tile must be a multiple of 128 lanes"
    assert (rows - 8) % 3 == 0
    h_pad = (rows - 8) // 3

    n_tiles = -(-B // batch_tile)
    b_pad = n_tiles * batch_tile

    # Batch on the lane axis; single pad op (no .at[].set() scatter chain).
    x_row = jnp.pad(x.astype(jnp.float32).reshape(1, B), ((0, 0), (0, b_pad - B)))

    kernel = functools.partial(mlp_kernel, h_pad=h_pad)
    out_shape = jax.ShapeDtypeStruct((1, b_pad), jnp.float32)

    if n_tiles == 1:
        # Single tile (the B=100 reference case): grid-less call, full blocks,
        # no pipeline prologue/epilogue.
        out = pl.pallas_call(kernel, out_shape=out_shape)(x_row, packed_params)
    else:
        out = pl.pallas_call(
            kernel,
            out_shape=out_shape,
            grid=(n_tiles,),
            in_specs=[
                pl.BlockSpec((1, batch_tile), lambda i: (0, i)),   # x tile
                pl.BlockSpec((rows, batch_tile), lambda i: (0, 0)),  # params resident
            ],
            out_specs=pl.BlockSpec((1, batch_tile), lambda i: (0, i)),
            compiler_params=pltpu.CompilerParams(
                dimension_semantics=("parallel",),   # v7x: tiles shard across TCs
            ),
        )(x_row, packed_params)

    # Back to PyTorch's (B, n_output) layout, dropping lane padding.
    return out[:, :B].T.astype(x.dtype)


def init_linear_params(key, in_features, out_features, dtype=jnp.float32):
    """Matches torch.nn.Linear default init: U(-1/sqrt(in), 1/sqrt(in)).
    Weight returned pre-transposed as (in_features, out_features)."""
    kw, kb = jax.random.split(key)
    bound = 1.0 / jnp.sqrt(jnp.asarray(in_features, dtype))
    w = jax.random.uniform(kw, (in_features, out_features), dtype, -bound, bound)
    b = jax.random.uniform(kb, (1, out_features), dtype, -bound, bound)
    return w, b


if __name__ == "__main__":
    # Shapes implied by the reference script: x = linspace(-1, 1, 100)[:, None],
    # Net(n_feature=1, n_hidden=10, n_output=1).
    n_feature, n_hidden, n_output = 1, 10, 1
    batch_tile = 512

    key = jax.random.PRNGKey(0)
    k1, k2 = jax.random.split(key)
    w1, b1 = init_linear_params(k1, n_feature, n_hidden)
    w2, b2 = init_linear_params(k2, n_hidden, n_output)

    # One-time packing (init-time, not per-forward).
    packed = jax.block_until_ready(pack_params(w1, b1, w2, b2, batch_tile=batch_tile))

    def ref_fn(x):
        return jnp.maximum(x @ w1 + b1, 0.0) @ w2 + b2

    # Case 1: the reference script's batch (single tile -> grid-less path).
    x1 = jnp.linspace(-1.0, 1.0, 100, dtype=jnp.float32).reshape(100, n_feature)
    y1 = jax.block_until_ready(net_forward(x1, packed))
    assert y1.shape == (100, n_output)
    assert jnp.allclose(y1, ref_fn(x1), atol=1e-5, rtol=1e-5)

    # Case 2: larger batch exercising the tiled "parallel" grid path (2 tiles).
    x2 = jax.random.uniform(jax.random.PRNGKey(1), (1000, n_feature),
                            jnp.float32, -1.0, 1.0)
    y2 = jax.block_until_ready(net_forward(x2, packed))
    assert y2.shape == (1000, n_output)
    assert jnp.allclose(y2, ref_fn(x2), atol=1e-5, rtol=1e-5)

    print("KERNEL_OK")
</pallas_src>

<mosaic_0001>
module attributes {stable_mosaic.version = 11 : i64} {
  func.func @mlp_kernel(%arg0: memref<1x512xf32, #tpu.memory_space<vmem>>, %arg1: memref<56x512xf32, #tpu.memory_space<vmem>>, %arg2: memref<1x512xf32, #tpu.memory_space<vmem>>) attributes {dimension_semantics = [], scalar_prefetch = 0 : i64, scratch_operands = 0 : i64, tpu.core_type = #tpu.core_type<tc>} {
    %c0 = arith.constant 0 : index
    %c0_0 = arith.constant 0 : index
    %0 = vector.load %arg0[%c0, %c0_0] : memref<1x512xf32, #tpu.memory_space<vmem>>, vector<1x512xf32>
    %c0_1 = arith.constant 0 : index
    %c0_2 = arith.constant 0 : index
    %1 = vector.load %arg1[%c0_1, %c0_2] : memref<56x512xf32, #tpu.memory_space<vmem>>, vector<16x512xf32>
    %c16 = arith.constant 16 : index
    %c0_3 = arith.constant 0 : index
    %2 = vector.load %arg1[%c16, %c0_3] : memref<56x512xf32, #tpu.memory_space<vmem>>, vector<16x512xf32>
    %c32 = arith.constant 32 : index
    %c0_4 = arith.constant 0 : index
    %3 = vector.load %arg1[%c32, %c0_4] : memref<56x512xf32, #tpu.memory_space<vmem>>, vector<16x512xf32>
    %c48 = arith.constant 48 : index
    %c0_5 = arith.constant 0 : index
    %4 = vector.load %arg1[%c48, %c0_5] : memref<56x512xf32, #tpu.memory_space<vmem>>, vector<1x512xf32>
    %5 = vector.broadcast %0 : vector<1x512xf32> to vector<16x512xf32>
    %6 = arith.mulf %1, %5 : vector<16x512xf32>
    %7 = arith.addf %6, %2 : vector<16x512xf32>
    %cst = arith.constant 0.000000e+00 : f32
    %8 = vector.broadcast %cst : f32 to vector<16x512xf32>
    %9 = arith.maximumf %7, %8 : vector<16x512xf32>
    %10 = arith.mulf %9, %3 : vector<16x512xf32>
    %cst_6 = arith.constant dense<0.000000e+00> : vector<512xf32>
    %11 = vector.multi_reduction <add>, %10, %cst_6 [0] : vector<16x512xf32> to vector<512xf32>
    %12 = vector.shape_cast %11 : vector<512xf32> to vector<1x512xf32>
    %13 = arith.addf %12, %4 : vector<1x512xf32>
    %c0_7 = arith.constant 0 : index
    %c0_8 = arith.constant 0 : index
    %14 = vector.load %arg2[%c0_7, %c0_8] : memref<1x512xf32, #tpu.memory_space<vmem>>, vector<1x512xf32>
    tpu.vector_store %arg2[%c0_7, %c0_8], %13 {strides = array<i32>} : memref<1x512xf32, #tpu.memory_space<vmem>>, vector<1x512xf32>,
    return
  }
}

</mosaic_0001>

<llo_original>
// kernel: net_forward.1
$region0: #{net_forward.1}
  #allocation0 [shape = 'u32[]', space=smem, size = 0x4, offset = 0x4, fixed_abs, tag = 'smem constant byte address 0x4 - core index']
  #allocation1 [shape = 'u32[144,128]{1,0:T(1,128)}', space=vmem, size = 0x12000, scoped, tag = 'internal scratch']
  %s0 = inlined_call_operand.vmem [shape: f32[1,512], index: 0, kind: input, shape index: {}]
  %s1 = inlined_call_operand.hbm [shape: f32[56,512], index: 1, kind: input, shape index: {}]
  %s2 = inlined_call_operand.vmem [shape: f32[1,512], index: 2, kind: output, shape index: {}]
  %s3 = sld [smem:[#allocation0]]
  $region22: #{net_forward.1} parent=0
    _
  %s5 = ssub.s32 1, %s3
  %s6 = scalar_select 0, %s5, %s3
  $region1: #{net_forward.1} parent=0
    #allocation2 [shape = 'u8[114688]{0}', space=vmem, size = 0x1c000, scoped, tag = 'input window, operand 1, single buffered']
    #allocation3 [shape = 's32[1]{0}', space=sflag, size = 0x4, scoped, tag = 'scoped memory for net_forward.1']
    %7 = vsyncpa [#allocation3], 0
    // Predicated region
    $region2: #{net_forward.1} parent=1 // pred_check
      _
    $region3: #{net_forward.1} parent=1 // pred_check_branch
      %9 = sbr.rel (0) target = $region5
    $region4: #{net_forward.1} parent=1 // pred_region
      _
    $region5: #{net_forward.1} parent=1 // pred_fallthru
      _
    // Predicated region
    $region6: #{net_forward.1} parent=1 // pred_check
      _
    $region7: #{net_forward.1} parent=1 // pred_check_branch
      %11 = sbr.rel (0) target = $region9
    $region8: #{net_forward.1} parent=1 // pred_region
      %s13 = ssub.s32 3584, 3584
      %14 = vsyncadd [#allocation3], %s13
      %s15 = sshll.u32 [#allocation2], 4
      %s16 = int_to_ptr.vmem [resolvable:$true] %s15
      %21 = dma.hbm_to_vmem [thread:$0]  %s1, 3584, %s16, [#allocation3], 512, 512, 32
    $region9: #{net_forward.1} parent=1 // pred_fallthru
      _
    // Predicated region
    $region10: #{net_forward.1} parent=1 // pred_check
      _
    $region11: #{net_forward.1} parent=1 // pred_check_branch
      %23 = sbr.rel (0) target = $region13
    $region12: #{net_forward.1} parent=1 // pred_region
      %24 = dma.done [#allocation3], 3584
    $region13: #{net_forward.1} parent=1 // pred_fallthru
      _
    %v25 = vld [vmem:[%s0] sm:$0xf]
    %v26 = vld [vmem:[#allocation2] sm:$0xff]
    %v27 = vld [vmem:[#allocation2 + $0x8] sm:$0xff]
    %v28 = vld [vmem:[#allocation2 + $0x10] sm:$0xff]
    %v29 = vld [vmem:[#allocation2 + $0x18] sm:$0xff]
    %v30 = vld [vmem:[#allocation2 + $0x20] sm:$0xff]
    %v31 = vld [vmem:[#allocation2 + $0x28] sm:$0xff]
    %v32 = vld [vmem:[#allocation2 + $0x30] sm:$0xff]
    %v33 = vld [vmem:[#allocation2 + $0x38] sm:$0xff]
    %v34 = vld [vmem:[#allocation2 + $0x40] sm:$0xff]
    %v35 = vld [vmem:[#allocation2 + $0x48] sm:$0xff]
    %v36 = vld [vmem:[#allocation2 + $0x50] sm:$0xff]
    %v37 = vld [vmem:[#allocation2 + $0x58] sm:$0xff]
    %v38 = vld [vmem:[#allocation2 + $0x60] sm:$0xff]
    %v39 = vld [vmem:[#allocation2 + $0x68] sm:$0xff]
    %v40 = vld [vmem:[#allocation2 + $0x70] sm:$0xff]
    %v41 = vld [vmem:[#allocation2 + $0x78] sm:$0xff]
    %v42 = vld [vmem:[#allocation2 + $0x80] sm:$0xff]
    %v43 = vld [vmem:[#allocation2 + $0x88] sm:$0xff]
    %v44 = vld [vmem:[#allocation2 + $0x90] sm:$0xff]
    %v45 = vld [vmem:[#allocation2 + $0x98] sm:$0xff]
    %v46 = vld [vmem:[#allocation2 + $0xa0] sm:$0xff]
    %v47 = vld [vmem:[#allocation2 + $0xa8] sm:$0xff]
    %v48 = vld [vmem:[#allocation2 + $0xb0] sm:$0xff]
    %v49 = vld [vmem:[#allocation2 + $0xb8] sm:$0xff]
    %s50 = scalar_lea.vmem [#allocation2], 192
    %v51 = vld [vmem:[%s50] ss:$8 sm:$0xf]
    %v53 = vlaneseq
    %v54 = vshrl.u32 %v53, 7
    %v55 = vsub.s32 0, %v54
    %v56 = vrot.slane %v25, %v55
    %v57 = vlaneseq
    %v58 = vshrl.u32 %v57, 7
    %v59 = vsub.s32 1, %v58
    %v60 = vrot.slane %v25, %v59
    %v61 = vlaneseq
    %v62 = vshrl.u32 %v61, 7
    %v63 = vsub.s32 2, %v62
    %v64 = vrot.slane %v25, %v63
    %v65 = vlaneseq
    %v66 = vshrl.u32 %v65, 7
    %v67 = vsub.s32 3, %v66
    %v68 = vrot.slane %v25, %v67
    %v73 = vmul.f32 %v26, %v56
    %v74 = vmul.f32 %v27, %v60
    %v75 = vmul.f32 %v28, %v64
    %v76 = vmul.f32 %v29, %v68
    %v77 = vmul.f32 %v30, %v56
    %v78 = vmul.f32 %v31, %v60
    %v79 = vmul.f32 %v32, %v64
    %v80 = vmul.f32 %v33, %v68
    %v81 = vadd.f32 %v73, %v34
    %v82 = vadd.f32 %v74, %v35
    %v83 = vadd.f32 %v75, %v36
    %v84 = vadd.f32 %v76, %v37
    %v85 = vadd.f32 %v77, %v38
    %v86 = vadd.f32 %v78, %v39
    %v87 = vadd.f32 %v79, %v40
    %v88 = vadd.f32 %v80, %v41
    %v89 = vmax.f32 %v81, 0.0
    %v90 = vmax.f32 %v82, 0.0
    %v91 = vmax.f32 %v83, 0.0
    %v92 = vmax.f32 %v84, 0.0
    %v93 = vmax.f32 %v85, 0.0
    %v94 = vmax.f32 %v86, 0.0
    %v95 = vmax.f32 %v87, 0.0
    %v96 = vmax.f32 %v88, 0.0
    %v97 = vmul.f32 %v89, %v42
    %v98 = vmul.f32 %v90, %v43
    %v99 = vmul.f32 %v91, %v44
    %v100 = vmul.f32 %v92, %v45
    %v101 = vmul.f32 %v93, %v46
    %v102 = vmul.f32 %v94, %v47
    %v103 = vmul.f32 %v95, %v48
    %v104 = vmul.f32 %v96, %v49
    %v105 = vadd.f32 %v97, %v101
    %v106 = vrot.slane %v105, 4
    %v107 = vadd.f32 %v105, %v106
    %v108 = vrot.slane %v107, 2
    %v109 = vadd.f32 %v107, %v108
    %v110 = vrot.slane %v109, 1
    %v111 = vadd.f32 %v109, %v110
    %v112 = vadd.f32 %v98, %v102
    %v113 = vrot.slane %v112, 4
    %v114 = vadd.f32 %v112, %v113
    %v115 = vrot.slane %v114, 2
    %v116 = vadd.f32 %v114, %v115
    %v117 = vrot.slane %v116, 1
    %v118 = vadd.f32 %v116, %v117
    %v119 = vadd.f32 %v99, %v103
    %v120 = vrot.slane %v119, 4
    %v121 = vadd.f32 %v119, %v120
    %v122 = vrot.slane %v121, 2
    %v123 = vadd.f32 %v121, %v122
    %v124 = vrot.slane %v123, 1
    %v125 = vadd.f32 %v123, %v124
    %v126 = vadd.f32 %v100, %v104
    %v127 = vrot.slane %v126, 4
    %v128 = vadd.f32 %v126, %v127
    %v129 = vrot.slane %v128, 2
    %v130 = vadd.f32 %v128, %v129
    %v131 = vrot.slane %v130, 1
    %v132 = vadd.f32 %v130, %v131
    %v134 = vlaneseq
    %v135 = vshrl.u32 %v134, 7
    %v136 = vsub.s32 0, %v135
    %v137 = vrot.slane %v51, %v136
    %v138 = vlaneseq
    %v139 = vshrl.u32 %v138, 7
    %v140 = vsub.s32 1, %v139
    %v141 = vrot.slane %v51, %v140
    %v142 = vlaneseq
    %v143 = vshrl.u32 %v142, 7
    %v144 = vsub.s32 2, %v143
    %v145 = vrot.slane %v51, %v144
    %v146 = vlaneseq
    %v147 = vshrl.u32 %v146, 7
    %v148 = vsub.s32 3, %v147
    %v149 = vrot.slane %v51, %v148
    %v154 = vadd.f32 %v111, %v137
    %v155 = vadd.f32 %v118, %v141
    %v156 = vadd.f32 %v125, %v145
    %v157 = vadd.f32 %v132, %v149
    %v162 = vcombine.low %v154, %v155
    %v163 = vcombine.low %v156, %v157
    %v165 = vunpack.c.l.s4 1966171168
    %v166 = vunpack.c.0.s8 %v165
    %v167 = vlaneseq
    %v168 = vshrl.u32 %v167, 7
    %v169 = vsub.s32 %v166, %v168
    %v170 = vrot.slane %v162, %v169
    %v172 = vunpack.c.l.s4 1966171168
    %v173 = vunpack.c.0.s8 %v172
    %v174 = vlaneseq
    %v175 = vshrl.u32 %v174, 7
    %v176 = vsub.s32 %v173, %v175
    %v177 = vrot.slane %v163, %v176
    %v178 = vcombine.low %v170, %v177
    %v180 = vunpack.c.l.s4 1966171168
    %v181 = vunpack.c.0.s8 %v180
    %v182 = vlaneseq
    %v183 = vshrl.u32 %v182, 7
    %v184 = vsub.s32 %v181, %v183
    %v185 = vrot.slane %v178, %v184
    %v187 = vlaneseq
    %vm188 = vcmp.ge.s32.totalorder %v187, 0
    %vm189 = vcmp.lt.s32.totalorder %v187, 512
    %vm190 = vmand %vm188, %vm189
    %191 = vst.msk [vmem:[%s2] sm:$0xf] %vm190, %v185
    // Predicated region
    $region14: #{net_forward.1} parent=1 // pred_check
      _
    $region15: #{net_forward.1} parent=1 // pred_check_branch
      %193 = sbr.rel (0) target = $region17
    $region16: #{net_forward.1} parent=1 // pred_region
      _
    $region17: #{net_forward.1} parent=1 // pred_fallthru
      _
    // Predicated region
    $region18: #{net_forward.1} parent=1 // pred_check
      _
    $region19: #{net_forward.1} parent=1 // pred_check_branch
      %195 = sbr.rel (0) target = $region21
    $region20: #{net_forward.1} parent=1 // pred_region
      _
    $region21: #{net_forward.1} parent=1 // pred_fallthru
      _
    %196 = vsyncpa [#allocation3], 1

</llo_original>
